<compile_context>
chip_gen: v7x
topology: tpu7x:2x2x1
jax: 0.10.0
libtpu: 0.0.40
codegen_flags: <defaults>
</compile_context>

<pallas_src>
import functools

import numpy as np
import jax
import jax.numpy as jnp
from jax.experimental import pallas as pl
from jax.experimental.pallas import tpu as pltpu

_LANES = 128
_QCOLS = 512                      # lane width of quantize tiles
_TILE_BYTES = 2 * 1024 * 1024     # ~2 MiB per input block (x2 for double-buffer)
_VMEM_LIMIT = 48 * 1024 * 1024    # <= 64 MiB physical VMEM on v7x


# ---------------------------------------------------------------------------
# Kernel 1: per-row running min / max (the heavy part of calculate_qparams).
# grid = (P, K): P partial partitions ("parallel"), K N-tiles ("arbitrary").
# Output blocks are resident accumulators across the K axis.
# ---------------------------------------------------------------------------
def _row_minmax_kernel(x_ref, min_ref, max_ref):
    k = pl.program_id(1)

    @pl.when(k == 0)
    def _():
        min_ref[...] = jnp.full_like(min_ref, jnp.inf)
        max_ref[...] = jnp.full_like(max_ref, -jnp.inf)

    x = x_ref[...].astype(jnp.float32)                          # (B, TK)
    min_ref[...] = jnp.minimum(min_ref[...], jnp.min(x, axis=1, keepdims=True))
    max_ref[...] = jnp.maximum(max_ref[...], jnp.max(x, axis=1, keepdims=True))


def _choose_col_tile(n_cols, bytes_per_col):
    """Largest lane-aligned tile width dividing n_cols with block <= ~2 MiB."""
    for cand in (4096, 2048, 1024, 512, 256, 128):
        if n_cols % cand == 0 and cand * bytes_per_col <= _TILE_BYTES:
            return cand
    return 128  # n_cols is always a multiple of 128 here


def row_minmax_pallas(x2d):
    """Per-row min / max (f32) of a (B, N) array, tiled over N."""
    B, N = x2d.shape
    itemsize = jnp.dtype(x2d.dtype).itemsize

    # Lane-align N; edge padding leaves each row's min/max unchanged.
    n_pad = (-N) % _LANES
    if n_pad:
        x2d = jnp.pad(x2d, ((0, 0), (0, n_pad)), mode="edge")
    Np = N + n_pad

    tk = _choose_col_tile(Np, B * itemsize)
    k_total = Np // tk
    if k_total >= 2 and k_total % 2 == 0:
        P, K = 2, k_total // 2      # two partial accumulators -> 2 TCs on v7x
    else:
        P, K = 1, k_total

    pmin, pmax = pl.pallas_call(
        _row_minmax_kernel,
        out_shape=(jax.ShapeDtypeStruct((B, P * _LANES), jnp.float32),
                   jax.ShapeDtypeStruct((B, P * _LANES), jnp.float32)),
        grid=(P, K),
        in_specs=[pl.BlockSpec((B, tk), lambda p, k: (0, p * K + k))],
        out_specs=(pl.BlockSpec((B, _LANES), lambda p, k: (0, p)),
                   pl.BlockSpec((B, _LANES), lambda p, k: (0, p))),
        compiler_params=pltpu.CompilerParams(
            dimension_semantics=("parallel", "arbitrary"),
            vmem_limit_bytes=_VMEM_LIMIT),
        cost_estimate=pl.CostEstimate(
            flops=2 * B * Np, transcendentals=0,
            bytes_accessed=B * Np * itemsize + 2 * B * P * _LANES * 4),
    )(x2d)

    # Combine the P partial accumulators (tiny, plain JAX).
    row_min = jnp.min(pmin.reshape(B, P, _LANES)[:, :, 0], axis=1)   # (B,)
    row_max = jnp.max(pmax.reshape(B, P, _LANES)[:, :, 0], axis=1)   # (B,)
    return row_min, row_max


# ---------------------------------------------------------------------------
# Scalar qparams math (hoisted out of the per-element kernel).
# ---------------------------------------------------------------------------
def _make_quant_params(rng, zp, qmin, qmax):
    rng = jnp.asarray(rng, jnp.float32).reshape(())
    zp = jnp.asarray(zp, jnp.float32).reshape(())
    rr = jnp.clip(rng, 1e-6, 1e5)                       # running_range.clamp
    scale = rr / (qmax - qmin)
    zpr = jnp.clip(jnp.round(qmin - zp / scale), qmin, qmax)
    zp_adj = (qmin - zpr) * scale
    pre = qmin * scale - zp_adj                          # added before scaling
    post = zp_adj - qmin * scale                         # added after dequant
    return jnp.stack([scale, 1.0 / scale, pre, post]).astype(jnp.float32)


# ---------------------------------------------------------------------------
# Kernel 2: UniformQuantize.forward (quantize + dequantize, elementwise).
# ---------------------------------------------------------------------------
def _quantize_kernel(params_ref, x_ref, o_ref, *, qmin, qmax):
    scale = params_ref[0]        # SMEM scalars: [scale, 1/scale, pre, post]
    inv_scale = params_ref[1]
    pre_add = params_ref[2]
    post_add = params_ref[3]

    x = x_ref[...].astype(jnp.float32)                  # (TR, 512)
    y = (x + pre_add) * inv_scale
    y = jnp.round(jnp.clip(y, qmin, qmax))
    y = y * scale + post_add                            # dequantize=True
    o_ref[...] = y.astype(o_ref.dtype)


def quantize_pallas(x, params, *, num_bits=8, signed=False):
    """Fake-quantize x elementwise, preserving shape and dtype."""
    qmin = -2.0 ** (num_bits - 1) if signed else 0.0
    qmax = qmin + 2.0 ** num_bits - 1.0

    orig_shape, orig_dtype = x.shape, x.dtype
    total = int(np.prod(orig_shape))
    itemsize = jnp.dtype(orig_dtype).itemsize

    # Flatten to a sublane/lane-dense (R, 512) layout with ~1-2 MiB row tiles.
    tr = max(8, _TILE_BYTES // (_QCOLS * itemsize))
    chunk = tr * _QCOLS
    flat = x.reshape(-1)
    if total <= chunk:
        padded = -(-total // _QCOLS) * _QCOLS
        rows = padded // _QCOLS
        tr = rows                                        # single full block
    else:
        padded = -(-total // chunk) * chunk
        rows = padded // _QCOLS
    if padded != total:
        flat = jnp.pad(flat, (0, padded - total))
    x2d = flat.reshape(rows, _QCOLS)

    kern = functools.partial(_quantize_kernel, qmin=qmin, qmax=qmax)
    q2d = pl.pallas_call(
        kern,
        out_shape=jax.ShapeDtypeStruct((rows, _QCOLS), orig_dtype),
        grid=(rows // tr,),
        in_specs=[pl.BlockSpec(memory_space=pltpu.MemorySpace.SMEM),
                  pl.BlockSpec((tr, _QCOLS), lambda i: (i, 0))],
        out_specs=pl.BlockSpec((tr, _QCOLS), lambda i: (i, 0)),
        compiler_params=pltpu.CompilerParams(
            dimension_semantics=("parallel",),
            vmem_limit_bytes=_VMEM_LIMIT),
        cost_estimate=pl.CostEstimate(
            flops=7 * padded, transcendentals=0,
            bytes_accessed=2 * padded * itemsize),
    )(params, x2d)

    return q2d.reshape(-1)[:total].reshape(orig_shape)


# ---------------------------------------------------------------------------
# QuantMeasure.forward wrapper
# ---------------------------------------------------------------------------
def quant_measure_forward(x, running_zero_point, running_range,
                          num_bits=8, momentum=0.1, training=True):
    # TODO(synk): measure / cal_qparams (scipy.optimize) / per_ch_input /
    # stochastic paths are not implemented (all disabled by module defaults).
    # TODO(synk): optional fused qparams+quantize single-call fast path for
    # small tensors (saves one HBM read) is not implemented.
    qmin = 0.0
    qmax = 2.0 ** num_bits - 1.0

    B = x.shape[0]
    N = int(np.prod(x.shape[1:]))
    x2d = x.reshape(B, N)           # native dtype; kernels upcast in-registers

    if training:
        row_min, row_max = row_minmax_pallas(x2d)
        zp = jnp.minimum(jnp.mean(row_min), 0.0)        # min_values[>0] = 0
        mx = jnp.maximum(jnp.mean(row_max), 0.0)        # max_values[<0] = 0
        rng = mx - zp
        rng = jnp.where(rng == 0.0, 1.0, rng)           # range[range==0] = 1
        # running buffer EMA update (shape_measure=(1,))
        new_rzp = running_zero_point * momentum + zp * (1.0 - momentum)
        new_rr = running_range * momentum + rng * (1.0 - momentum)
    else:
        rng = running_range.reshape(()).astype(jnp.float32)
        zp = running_zero_point.reshape(()).astype(jnp.float32)
        new_rzp, new_rr = running_zero_point, running_range

    params = _make_quant_params(rng, zp, qmin, qmax)
    q = quantize_pallas(x, params, num_bits=num_bits, signed=False)
    return q, new_rzp, new_rr


# ---------------------------------------------------------------------------
# Pure-JAX reference of the same forward (mirrors the kernel's precomputed
# reciprocal multiply instead of the per-element divide).
# ---------------------------------------------------------------------------
def _reference(x, num_bits=8):
    B = x.shape[0]
    xf = x.reshape(B, -1).astype(jnp.float32)
    mn = jnp.minimum(jnp.mean(jnp.min(xf, axis=1)), 0.0)
    mx = jnp.maximum(jnp.mean(jnp.max(xf, axis=1)), 0.0)
    rng = jnp.where(mx - mn == 0.0, 1.0, mx - mn)
    qmin, qmax = 0.0, 2.0 ** num_bits - 1.0
    scale = jnp.clip(rng, 1e-6, 1e5) / (qmax - qmin)
    zpr = jnp.clip(jnp.round(qmin - mn / scale), qmin, qmax)
    zp = (qmin - zpr) * scale
    y = (xf + (qmin * scale - zp)) * (1.0 / scale)
    y = jnp.round(jnp.clip(y, qmin, qmax))
    y = y * scale + (zp - qmin * scale)
    return y.reshape(x.shape)


if __name__ == "__main__":
    key = jax.random.PRNGKey(0)
    x = jax.random.normal(key, (2, 4, 16, 16), dtype=jnp.float32)

    # deterministic buffer init (register_buffer('running_*', torch.zeros(1)))
    running_zero_point = jnp.zeros((1,), jnp.float32)
    running_range = jnp.zeros((1,), jnp.float32)

    q, new_rzp, new_rr = quant_measure_forward(
        x, running_zero_point, running_range, num_bits=8, momentum=0.1,
        training=True)
    jax.block_until_ready((q, new_rzp, new_rr))

    ref = _reference(x, num_bits=8)
    assert q.shape == x.shape and q.dtype == x.dtype
    assert jnp.allclose(q, ref, atol=1e-5), float(jnp.max(jnp.abs(q - ref)))

    # dtype preservation path (native bf16 in/out, no wrapper-side f32 copy)
    xb = x.astype(jnp.bfloat16)
    qb, _, _ = quant_measure_forward(xb, running_zero_point, running_range,
                                     training=True)
    jax.block_until_ready(qb)
    assert qb.shape == xb.shape and qb.dtype == jnp.bfloat16

    # eval path (uses running buffers, skips the reduction kernel)
    qe, _, _ = quant_measure_forward(x, new_rzp, new_rr, training=False)
    jax.block_until_ready(qe)
    assert qe.shape == x.shape and bool(jnp.all(jnp.isfinite(qe)))

    print("KERNEL_OK")
</pallas_src>

<mosaic_0001>
module attributes {stable_mosaic.version = 11 : i64} {
  func.func @_row_minmax_kernel(%arg0: i32, %arg1: i32, %arg2: memref<2x1024xf32, #tpu.memory_space<vmem>>, %arg3: memref<2x128xf32, #tpu.memory_space<vmem>>, %arg4: memref<2x128xf32, #tpu.memory_space<vmem>>) attributes {dimension_semantics = [#tpu.dimension_semantics<parallel>, #tpu.dimension_semantics<arbitrary>], iteration_bounds = array<i64: 1, 1>, scalar_prefetch = 0 : i64, scratch_operands = 0 : i64, tpu.core_type = #tpu.core_type<tc>, window_params = [{transform_indices = @transform_0, window_bounds = array<i64: 2, 1024>}, {transform_indices = @transform_1, window_bounds = array<i64: 2, 128>}, {transform_indices = @transform_2, window_bounds = array<i64: 2, 128>}]} {
    %c0_i32 = arith.constant 0 : i32
    %0 = arith.cmpi eq, %arg1, %c0_i32 : i32
    %1 = arith.extui %0 : i1 to i32
    %c0_i32_0 = arith.constant 0 : i32
    %2 = arith.cmpi ne, %1, %c0_i32_0 : i32
    scf.if %2 {
      %cst_11 = arith.constant 0x7F800000 : f32
      %16 = vector.broadcast %cst_11 : f32 to vector<2x128xf32>
      %c0_12 = arith.constant 0 : index
      %c0_13 = arith.constant 0 : index
      %17 = vector.load %arg3[%c0_12, %c0_13] : memref<2x128xf32, #tpu.memory_space<vmem>>, vector<2x128xf32>
      tpu.vector_store %arg3[%c0_12, %c0_13], %16 {strides = array<i32>} : memref<2x128xf32, #tpu.memory_space<vmem>>, vector<2x128xf32>,
      %cst_14 = arith.constant 0xFF800000 : f32
      %18 = vector.broadcast %cst_14 : f32 to vector<2x128xf32>
      %c0_15 = arith.constant 0 : index
      %c0_16 = arith.constant 0 : index
      %19 = vector.load %arg4[%c0_15, %c0_16] : memref<2x128xf32, #tpu.memory_space<vmem>>, vector<2x128xf32>
      tpu.vector_store %arg4[%c0_15, %c0_16], %18 {strides = array<i32>} : memref<2x128xf32, #tpu.memory_space<vmem>>, vector<2x128xf32>,
    } else {
    }
    %c0 = arith.constant 0 : index
    %c0_1 = arith.constant 0 : index
    %3 = vector.load %arg2[%c0, %c0_1] : memref<2x1024xf32, #tpu.memory_space<vmem>>, vector<2x1024xf32>
    %c0_2 = arith.constant 0 : index
    %c0_3 = arith.constant 0 : index
    %4 = vector.load %arg3[%c0_2, %c0_3] : memref<2x128xf32, #tpu.memory_space<vmem>>, vector<2x128xf32>
    %cst = arith.constant dense<0x7F800000> : vector<2xf32>
    %5 = vector.multi_reduction <minimumf>, %3, %cst [1] : vector<2x1024xf32> to vector<2xf32>
    %6 = vector.shape_cast %5 : vector<2xf32> to vector<2x1xf32>
    %7 = vector.broadcast %6 : vector<2x1xf32> to vector<2x128xf32>
    %8 = arith.minimumf %4, %7 : vector<2x128xf32>
    %c0_4 = arith.constant 0 : index
    %c0_5 = arith.constant 0 : index
    %9 = vector.load %arg3[%c0_4, %c0_5] : memref<2x128xf32, #tpu.memory_space<vmem>>, vector<2x128xf32>
    tpu.vector_store %arg3[%c0_4, %c0_5], %8 {strides = array<i32>} : memref<2x128xf32, #tpu.memory_space<vmem>>, vector<2x128xf32>,
    %c0_6 = arith.constant 0 : index
    %c0_7 = arith.constant 0 : index
    %10 = vector.load %arg4[%c0_6, %c0_7] : memref<2x128xf32, #tpu.memory_space<vmem>>, vector<2x128xf32>
    %cst_8 = arith.constant dense<0xFF800000> : vector<2xf32>
    %11 = vector.multi_reduction <maximumf>, %3, %cst_8 [1] : vector<2x1024xf32> to vector<2xf32>
    %12 = vector.shape_cast %11 : vector<2xf32> to vector<2x1xf32>
    %13 = vector.broadcast %12 : vector<2x1xf32> to vector<2x128xf32>
    %14 = arith.maximumf %10, %13 : vector<2x128xf32>
    %c0_9 = arith.constant 0 : index
    %c0_10 = arith.constant 0 : index
    %15 = vector.load %arg4[%c0_9, %c0_10] : memref<2x128xf32, #tpu.memory_space<vmem>>, vector<2x128xf32>
    tpu.vector_store %arg4[%c0_9, %c0_10], %14 {strides = array<i32>} : memref<2x128xf32, #tpu.memory_space<vmem>>, vector<2x128xf32>,
    return
  }
  func.func @transform_0(%arg0: i32, %arg1: i32) -> (i32, i32) {
    %c1_i32 = arith.constant 1 : i32
    %0 = arith.muli %arg0, %c1_i32 : i32
    %1 = arith.addi %0, %arg1 : i32
    %c0_i32 = arith.constant 0 : i32
    %c0_i32_0 = arith.constant 0 : i32
    return %c0_i32, %1 : i32, i32
  }
  func.func @transform_1(%arg0: i32, %arg1: i32) -> (i32, i32) {
    %c0_i32 = arith.constant 0 : i32
    %c0_i32_0 = arith.constant 0 : i32
    return %c0_i32, %arg0 : i32, i32
  }
  func.func @transform_2(%arg0: i32, %arg1: i32) -> (i32, i32) {
    %c0_i32 = arith.constant 0 : i32
    %c0_i32_0 = arith.constant 0 : i32
    return %c0_i32, %arg0 : i32, i32
  }
}

</mosaic_0001>

<llo_original>
// kernel: tpu_custom_call.1
$region0: #{tpu_custom_call.1}
  #allocation0 [shape = 'u32[]', space=smem, size = 0x4, offset = 0x4, fixed_abs, tag = 'smem constant byte address 0x4 - core index']
  #allocation1 [shape = 'u32[144,128]{1,0:T(1,128)}', space=vmem, size = 0x12000, scoped, tag = 'internal scratch']
  %s0 = inlined_call_operand.hbm [shape: f32[2,1024], index: 0, kind: input, shape index: {}]
  %s1 = inlined_call_operand.hbm [shape: f32[2,128], index: 1, kind: output, shape index: {0}]
  %s2 = inlined_call_operand.hbm [shape: f32[2,128], index: 2, kind: output, shape index: {1}]
  %3 = xla_tuple %s1, %s2
  %s4 = sld [smem:[#allocation0]]
  $region30: #{tpu_custom_call.1} parent=0
    _
  %s6 = ssub.s32 1, %s4
  %s7 = scalar_select 0, %s6, %s4
  $region1: #{tpu_custom_call.1} parent=0
    #allocation2 [shape = 'u8[8192]{0}', space=vmem, size = 0x2000, scoped, tag = 'input window, operand 0, single buffered']
    #allocation3 [shape = 's32[1]{0}', space=sflag, size = 0x4, scoped, tag = 'scoped memory for tpu_custom_call.1']
    #allocation4 [shape = 's32[1]{0}', space=sflag, size = 0x4, scoped, tag = 'scoped memory for tpu_custom_call.1']
    #allocation5 [shape = 'u8[1024]{0}', space=vmem, size = 0x400, scoped, tag = 'output window, operand 0, single buffered']
    #allocation6 [shape = 'u8[1024]{0}', space=vmem, size = 0x400, scoped, tag = 'output window, operand 1, single buffered']
    #allocation7 [shape = 's32[1]{0}', space=sflag, size = 0x4, scoped, tag = 'scoped memory for tpu_custom_call.1']
    %8 = vsyncpa [#allocation3], 0
    %9 = vsyncpa [#allocation4], 0
    %10 = vsyncpa [#allocation7], 0
    // Predicated region
    $region2: #{tpu_custom_call.1} parent=1 // pred_check
      _
    $region3: #{tpu_custom_call.1} parent=1 // pred_check_branch
      %12 = sbr.rel (0) target = $region5
    $region4: #{tpu_custom_call.1} parent=1 // pred_region
      %s13 = sadd.s32 0, 0
      %s14 = smul.u32 8, %s13
      %s16 = ssub.s32 256, 256
      %17 = vsyncadd [#allocation3], %s16
      %s18 = smul.addr %s14, 32
      %s19 = scalar_lea.hbm %s0, %s18
      %s21 = sshll.u32 [#allocation2], 4
      %s22 = int_to_ptr.vmem [resolvable:$true] %s21
      %24 = dma.hbm_to_vmem [thread:$0]  %s19, 256, %s22, [#allocation3]
    $region5: #{tpu_custom_call.1} parent=1 // pred_fallthru
      _
    // Predicated region
    $region6: #{tpu_custom_call.1} parent=1 // pred_check
      _
    $region7: #{tpu_custom_call.1} parent=1 // pred_check_branch
      %26 = sbr.rel (0) target = $region9
    $region8: #{tpu_custom_call.1} parent=1 // pred_region
      %27 = dma.done [#allocation3], 256
    $region9: #{tpu_custom_call.1} parent=1 // pred_fallthru
      _
    %s28 = sadd.s32 0, 0
    %s29 = smul.u32 8, %s28
    %p30 = scmp.eq.s32.totalorder 0, 0
    // Predicated region
    $region10: #{tpu_custom_call.1} parent=1 // pred_check
      %p31 = pneg %p30
    $region11: #{tpu_custom_call.1} parent=1 // pred_check_branch
      %33 = sbr.rel (%p31) target = $region13
    $region12: #{tpu_custom_call.1} parent=1 // pred_region
      %34 = vst [vmem:[#allocation5] sm:$0x3] inf
      %35 = vst [vmem:[#allocation6] sm:$0x3] -inf
    $region13: #{tpu_custom_call.1} parent=1 // pred_fallthru
      _
    %v36 = vld [vmem:[#allocation2] sm:$0xff]
    %v37 = vld [vmem:[#allocation2 + $0x8] sm:$0xff]
    %v38 = vld [vmem:[#allocation5] sm:$0x3]
    %v41 = vcombine.high %v36, %v36
    %v43 = vunpack.c.l.s4 1983009808
    %v44 = vunpack.c.0.s8 %v43
    %v45 = vlaneseq
    %v46 = vshrl.u32 %v45, 7
    %v47 = vsub.s32 %v44, %v46
    %v48 = vrot.slane %v36, %v47
    %v50 = vunpack.c.l.s4 1983009808
    %v51 = vunpack.c.0.s8 %v50
    %v52 = vlaneseq
    %v53 = vshrl.u32 %v52, 7
    %v54 = vsub.s32 %v51, %v53
    %v55 = vrot.slane %v41, %v54
    %v56 = vcombine.high %v48, %v48
    %v57 = vcombine.high %v55, %v55
    %v58 = vcombine.high %v37, %v37
    %v60 = vunpack.c.l.s4 1983009808
    %v61 = vunpack.c.0.s8 %v60
    %v62 = vlaneseq
    %v63 = vshrl.u32 %v62, 7
    %v64 = vsub.s32 %v61, %v63
    %v65 = vrot.slane %v37, %v64
    %v67 = vunpack.c.l.s4 1983009808
    %v68 = vunpack.c.0.s8 %v67
    %v69 = vlaneseq
    %v70 = vshrl.u32 %v69, 7
    %v71 = vsub.s32 %v68, %v70
    %v72 = vrot.slane %v58, %v71
    %v73 = vcombine.high %v65, %v65
    %v74 = vcombine.high %v72, %v72
    %vm83 = vcmask 1041408
    %v84 = vsel %vm83, %v48, inf
    %v85 = vsel %vm83, %v56, inf
    %v86 = vsel %vm83, %v55, inf
    %v87 = vsel %vm83, %v57, inf
    %v88 = vsel %vm83, %v65, inf
    %v89 = vmin.f32 %v84, %v88
    %v90 = vsel %vm83, %v73, inf
    %v91 = vmin.f32 %v85, %v90
    %v92 = vsel %vm83, %v72, inf
    %v93 = vmin.f32 %v86, %v92
    %v94 = vsel %vm83, %v74, inf
    %v95 = vmin.f32 %v87, %v94
    %v96 = vmin.f32 %v89, %v91
    %v97 = vmin.f32 %v93, %v95
    %v98 = vmin.f32 %v96, %v97
    %99 = vmin.xlane.f32.xlu0 %v98
    %v100 = vpop.xlane.xlu0 %99
    %v101 = vmin.f32 %v38, %v100
    %102 = vst [vmem:[#allocation5] sm:$0x3] %v101
    %v103 = vld [vmem:[#allocation6] sm:$0x3]
    %v104 = vsel %vm83, %v48, -inf
    %v105 = vsel %vm83, %v56, -inf
    %v106 = vsel %vm83, %v55, -inf
    %v107 = vsel %vm83, %v57, -inf
    %v108 = vsel %vm83, %v65, -inf
    %v109 = vmax.f32 %v104, %v108
    %v110 = vsel %vm83, %v73, -inf
    %v111 = vmax.f32 %v105, %v110
    %v112 = vsel %vm83, %v72, -inf
    %v113 = vmax.f32 %v106, %v112
    %v114 = vsel %vm83, %v74, -inf
    %v115 = vmax.f32 %v107, %v114
    %v116 = vmax.f32 %v109, %v111
    %v117 = vmax.f32 %v113, %v115
    %v118 = vmax.f32 %v116, %v117
    %119 = vmax.xlane.f32.xlu0 %v118
    %v120 = vpop.xlane.xlu0 %119
    %v121 = vmax.f32 %v103, %v120
    %122 = vst [vmem:[#allocation6] sm:$0x3] %v121
    // Predicated region
    $region14: #{tpu_custom_call.1} parent=1 // pred_check
      _
    $region15: #{tpu_custom_call.1} parent=1 // pred_check_branch
      %124 = sbr.rel (0) target = $region17
    $region16: #{tpu_custom_call.1} parent=1 // pred_region
      %s126 = ssub.s32 32, 32
      %127 = vsyncadd [#allocation4], %s126
      %s129 = sshll.u32 [#allocation5], 4
      %s130 = int_to_ptr.vmem [resolvable:$true] %s129
      %132 = dma.vmem_to_hbm [thread:$0]  %s130, 32, %s1, [#allocation4]
    $region17: #{tpu_custom_call.1} parent=1 // pred_fallthru
      _
    // Predicated region
    $region18: #{tpu_custom_call.1} parent=1 // pred_check
      _
    $region19: #{tpu_custom_call.1} parent=1 // pred_check_branch
      %134 = sbr.rel (0) target = $region21
    $region20: #{tpu_custom_call.1} parent=1 // pred_region
      %s136 = ssub.s32 32, 32
      %137 = vsyncadd [#allocation7], %s136
      %s139 = sshll.u32 [#allocation6], 4
      %s140 = int_to_ptr.vmem [resolvable:$true] %s139
      %142 = dma.vmem_to_hbm [thread:$0]  %s140, 32, %s2, [#allocation7]
    $region21: #{tpu_custom_call.1} parent=1 // pred_fallthru
      _
    // Predicated region
    $region22: #{tpu_custom_call.1} parent=1 // pred_check
      _
    $region23: #{tpu_custom_call.1} parent=1 // pred_check_branch
      %144 = sbr.rel (0) target = $region25
    $region24: #{tpu_custom_call.1} parent=1 // pred_region
      %145 = dma.done [#allocation4], 32
    $region25: #{tpu_custom_call.1} parent=1 // pred_fallthru
      _
    // Predicated region
    $region26: #{tpu_custom_call.1} parent=1 // pred_check
      _
    $region27: #{tpu_custom_call.1} parent=1 // pred_check_branch
      %147 = sbr.rel (0) target = $region29
    $region28: #{tpu_custom_call.1} parent=1 // pred_region
      %148 = dma.done [#allocation7], 32
    $region29: #{tpu_custom_call.1} parent=1 // pred_fallthru
      _
    %149 = vsyncpa [#allocation3], 1
    %150 = vsyncpa [#allocation4], 1
    %151 = vsyncpa [#allocation7], 1

</llo_original>
